<compile_context>
chip_gen: v7x
topology: tpu7x:2x2x1
jax: 0.10.0
libtpu: 0.0.40
codegen_flags: <defaults>
</compile_context>

<pallas_src>
import functools

import jax
import jax.numpy as jnp
from jax import lax
from jax.experimental import pallas as pl
from jax.experimental.pallas import tpu as pltpu

_LANES = 128
_SUBLANES = 8


def _acc_update(acc_ref, prod):
    """Accumulate a (n_blk, r_blk, 128) f32 product tile into an (8, 128) accumulator."""
    n_blk, r_blk, _ = prod.shape
    nr = n_blk * r_blk
    if nr % _SUBLANES == 0:
        # Pure leading-axis vreg adds; sublane+lane reduce deferred to the epilogue.
        acc_ref[...] += prod.reshape(nr // _SUBLANES, _SUBLANES, _LANES).sum(axis=0)
    else:
        # Tiny-tile fallback (e.g. whole problem in one small block).
        acc_ref[0:1, :] = acc_ref[0:1, :] + jnp.sum(
            prod, axis=(0, 1), keepdims=True).reshape(1, _LANES)


def _dice_kernel(x_ref, t_ref, out_ref, acc_xt, acc_xx, acc_tt, *,
                 mask_axis, mask_total):
    nb = pl.program_id(1)
    r = pl.program_id(2)

    @pl.when((nb == 0) & (r == 0))
    def _():
        acc_xt[...] = jnp.zeros_like(acc_xt)
        acc_xx[...] = jnp.zeros_like(acc_xx)
        acc_tt[...] = jnp.zeros_like(acc_tt)

    # (n_blk, r_blk, 128) tile of the current class slice; upcast after the load so
    # narrow HBM dtypes (bf16 inputs / bf16-or-int8 one-hot targets) stay narrow in HBM.
    x = x_ref[...].astype(jnp.float32)
    t = t_ref[...].astype(jnp.float32)

    if mask_axis is not None:
        # Last block along `mask_axis` does not divide the array: zero the
        # out-of-bounds rows (cheap VALU cmp/select, hidden under the DMA).
        blk = x.shape[mask_axis]
        tile_idx = nb if mask_axis == 0 else r
        remaining = mask_total - tile_idx * blk
        pos = lax.broadcasted_iota(jnp.int32, x.shape, mask_axis)
        keep = pos < remaining
        x = jnp.where(keep, x, 0.0)
        t = jnp.where(keep, t, 0.0)

    _acc_update(acc_xt, x * t)
    _acc_update(acc_xx, x * x)
    _acc_update(acc_tt, t * t)

    @pl.when((nb == pl.num_programs(1) - 1) & (r == pl.num_programs(2) - 1))
    def _():
        smooth = 1e-10
        intersect = jnp.sum(acc_xt[...])
        z_sum = jnp.sum(acc_xx[...])
        y_sum = jnp.sum(acc_tt[...])
        dice = 1.0 - (2.0 * intersect + smooth) / (z_sum + y_sum + smooth)
        # Broadcast the per-class dice term into this class's lane-dense output block.
        out_ref[...] = dice + jnp.zeros_like(out_ref)


def _pick_tiling(N, r0, x_itemsize, t_itemsize):
    """Generation-aware tile sizes: (n_blk, r_blk, vmem_limit_bytes)."""
    try:
        phys_vmem = int(pltpu.get_tpu_info().vmem_capacity_bytes)
    except Exception:
        phys_vmem = 64 << 20  # assume the smallest generation (v7x per-TC VMEM)
    # 32 MiB on v7x (64 MiB physical), 64 MiB on v5e/v6e (128 MiB physical).
    vmem_limit = int(min(phys_vmem // 2, 64 << 20))
    # Double-buffered inputs dominate VMEM; keep ~30% headroom for output block,
    # accumulators and compiler-internal scratch.
    budget = (vmem_limit * 7) // 10
    bytes_per_row = _LANES * (x_itemsize + t_itemsize) * 2  # x2 pipeline buffers
    row_budget = max(_SUBLANES, budget // bytes_per_row)

    if N * r0 <= row_budget:
        # Whole class slice (all samples, all rows) in a single block.
        n_blk, r_blk = N, r0
    elif r0 <= row_budget:
        # Full spatial extent per sample; pack as many samples per block as fit,
        # so the block stays near the VMEM budget for any batch size.
        n_blk, r_blk = max(1, row_budget // r0), r0
    else:
        # Single sample per block; tile the spatial axis.  Multiple of 32 rows keeps
        # the block a valid native tile for f32 / bf16 / int8 inputs alike.
        n_blk = 1
        r_blk = max(32, (row_budget // 32) * 32)
    return n_blk, r_blk, vmem_limit


def dice_loss(inputs, target, n_classes, weight=None, softmax=False):
    """Mirrors DiceLoss.forward: returns the scalar mean weighted dice loss."""
    assert inputs.shape == target.shape, 'predict & target shape do not match'
    if softmax:
        # TODO(synk): fuse softmax into the kernel (full-C blocks, grid over spatial
        # only, exp on the EUP slot) to drop the extra HBM round-trip on this path.
        inputs = jax.nn.softmax(inputs, axis=1)
    if weight is None:
        weight = jnp.ones((n_classes,), dtype=jnp.float32)
    else:
        weight = jnp.asarray(weight, dtype=jnp.float32)
        assert weight.shape == (n_classes,), 'weight must have n_classes entries'

    N, C, H, W = inputs.shape
    assert C == n_classes
    S = H * W
    r0 = pl.cdiv(S, _LANES)  # 128-lane rows per (n, c) slice

    x = inputs.reshape(N, C, S)
    t = target.reshape(N, C, S)
    if r0 * _LANES != S:
        # Only when H*W is not 128-aligned; pads to lane granularity only (exact:
        # zeros contribute nothing to any of the three sums).
        # TODO(synk): replace with an in-kernel tail mask on a non-reshaped layout
        # to avoid this extra HBM copy for misaligned H*W.
        pad = ((0, 0), (0, 0), (0, r0 * _LANES - S))
        x = jnp.pad(x, pad)
        t = jnp.pad(t, pad)
    x = x.reshape(N, C, r0, _LANES)  # splits the minor dim only -> free
    t = t.reshape(N, C, r0, _LANES)

    n_blk, r_blk, vmem_limit = _pick_tiling(N, r0, x.dtype.itemsize, t.dtype.itemsize)
    n_grid = pl.cdiv(N, n_blk)
    r_grid = pl.cdiv(r0, r_blk)

    # At most one axis can have a partial trailing block (see _pick_tiling).
    if n_grid * n_blk != N:
        mask_axis, mask_total = 0, N
    elif r_grid * r_blk != r0:
        mask_axis, mask_total = 1, r0
    else:
        mask_axis, mask_total = None, 0

    kernel = functools.partial(_dice_kernel, mask_axis=mask_axis, mask_total=mask_total)

    grid = (C, n_grid, r_grid)
    grid_spec = pltpu.PrefetchScalarGridSpec(
        num_scalar_prefetch=0,
        grid=grid,
        in_specs=[
            pl.BlockSpec((n_blk, None, r_blk, _LANES), lambda c, nb, r: (nb, c, r, 0)),
            pl.BlockSpec((n_blk, None, r_blk, _LANES), lambda c, nb, r: (nb, c, r, 0)),
        ],
        out_specs=pl.BlockSpec((None, _SUBLANES, _LANES), lambda c, nb, r: (c, 0, 0)),
        scratch_shapes=[pltpu.VMEM((_SUBLANES, _LANES), jnp.float32)] * 3,
    )

    out = pl.pallas_call(
        kernel,
        out_shape=jax.ShapeDtypeStruct((C, _SUBLANES, _LANES), jnp.float32),
        grid_spec=grid_spec,
        compiler_params=pltpu.CompilerParams(
            # TODO(synk): on v7x (2 TensorCores/chip) mark the class axis
            # pltpu.CORE_PARALLEL (or split the reduction across cores via
            # pl.core_map and combine partial sums in the wrapper) to guarantee
            # both TCs stream HBM concurrently; "parallel" is sufficient elsewhere.
            dimension_semantics=("parallel", "arbitrary", "arbitrary"),
            vmem_limit_bytes=vmem_limit,
        ),
        cost_estimate=pl.CostEstimate(
            flops=6 * N * C * S,
            transcendentals=0,
            bytes_accessed=x.nbytes + t.nbytes + C * _SUBLANES * _LANES * 4),
    )(x, t)

    dice_per_class = out[:, 0, 0]  # (C,)
    # Class weights and the 1/n_classes factor folded into the wrapper-side combine.
    return jnp.sum(dice_per_class * weight) / n_classes


def _dice_loss_ref(inputs, target, n_classes, weight=None, softmax=False):
    """Pure-JAX reference replicating the PyTorch module semantics."""
    if softmax:
        inputs = jax.nn.softmax(inputs, axis=1)
    if weight is None:
        weight = [1.0] * n_classes
    smooth = 1e-10
    loss = 0.0
    for i in range(n_classes):
        s = inputs[:, i].astype(jnp.float32)
        t = target[:, i].astype(jnp.float32)
        intersect = jnp.sum(s * t)
        y_sum = jnp.sum(t * t)
        z_sum = jnp.sum(s * s)
        dice = 1.0 - (2.0 * intersect + smooth) / (z_sum + y_sum + smooth)
        loss = loss + dice * weight[i]
    return loss / n_classes


if __name__ == "__main__":
    n_classes = 4
    N, C, H, W = 2, n_classes, 16, 16

    key = jax.random.PRNGKey(0)
    k1, k2 = jax.random.split(key)

    # predictions: softmax-normalized scores in NCHW
    logits = jax.random.normal(k1, (N, C, H, W), dtype=jnp.float32)
    inputs = jax.nn.softmax(logits, axis=1)

    # target: one-hot segmentation map in NCHW (same shape as inputs).
    # Note: a bf16/int8 one-hot target is also supported (exact; the kernel upcasts
    # after the load), halving the target's HBM traffic on large inputs.
    labels = jax.random.randint(k2, (N, H, W), 0, n_classes)
    target = jax.nn.one_hot(labels, n_classes, dtype=jnp.float32)  # N,H,W,C
    target = jnp.transpose(target, (0, 3, 1, 2))                   # N,C,H,W

    # Unweighted, softmax=False path.
    loss = dice_loss(inputs, target, n_classes)
    loss = jax.block_until_ready(loss)
    ref = _dice_loss_ref(inputs, target, n_classes)
    assert jnp.allclose(loss, ref, atol=1e-6, rtol=1e-5), (loss, ref)

    # Weighted, softmax=True path (softmax applied in the wrapper for both).
    w = [0.5, 1.0, 2.0, 1.5]
    loss_w = dice_loss(logits, target, n_classes, weight=w, softmax=True)
    loss_w = jax.block_until_ready(loss_w)
    ref_w = _dice_loss_ref(logits, target, n_classes, weight=w, softmax=True)
    assert jnp.allclose(loss_w, ref_w, atol=1e-6, rtol=1e-5), (loss_w, ref_w)

    print("KERNEL_OK")
</pallas_src>

<mosaic_0001>
module attributes {stable_mosaic.version = 11 : i64} {
  func.func @_dice_kernel(%arg0: i32, %arg1: i32, %arg2: i32, %arg3: memref<2x1x2x128xf32, #tpu.memory_space<vmem>>, %arg4: memref<2x1x2x128xf32, #tpu.memory_space<vmem>>, %arg5: memref<1x8x128xf32, #tpu.memory_space<vmem>>, %arg6: memref<8x128xf32, #tpu.memory_space<vmem>>, %arg7: memref<8x128xf32, #tpu.memory_space<vmem>>, %arg8: memref<8x128xf32, #tpu.memory_space<vmem>>) attributes {dimension_semantics = [#tpu.dimension_semantics<parallel>, #tpu.dimension_semantics<arbitrary>, #tpu.dimension_semantics<arbitrary>], iteration_bounds = array<i64: 4, 1, 1>, scalar_prefetch = 0 : i64, scratch_operands = 3 : i64, tpu.core_type = #tpu.core_type<tc>, window_params = [{transform_indices = @transform_0, window_bounds = array<i64: 2, 1, 2, 128>}, {transform_indices = @transform_1, window_bounds = array<i64: 2, 1, 2, 128>}, {transform_indices = @transform_2, window_bounds = array<i64: 1, 8, 128>}]} {
    %c0_i32 = arith.constant 0 : i32
    %0 = arith.cmpi eq, %arg1, %c0_i32 : i32
    %c0_i32_0 = arith.constant 0 : i32
    %1 = arith.cmpi eq, %arg2, %c0_i32_0 : i32
    %2 = arith.andi %0, %1 : i1
    %3 = arith.extui %2 : i1 to i32
    %c0_i32_1 = arith.constant 0 : i32
    %4 = arith.cmpi ne, %3, %c0_i32_1 : i32
    scf.if %4 {
      %cst_26 = arith.constant 0.000000e+00 : f32
      %35 = vector.broadcast %cst_26 : f32 to vector<8x128xf32>
      %c0_27 = arith.constant 0 : index
      %c0_28 = arith.constant 0 : index
      %36 = vector.load %arg6[%c0_27, %c0_28] : memref<8x128xf32, #tpu.memory_space<vmem>>, vector<8x128xf32>
      tpu.vector_store %arg6[%c0_27, %c0_28], %35 {strides = array<i32>} : memref<8x128xf32, #tpu.memory_space<vmem>>, vector<8x128xf32>,
      %cst_29 = arith.constant 0.000000e+00 : f32
      %37 = vector.broadcast %cst_29 : f32 to vector<8x128xf32>
      %c0_30 = arith.constant 0 : index
      %c0_31 = arith.constant 0 : index
      %38 = vector.load %arg7[%c0_30, %c0_31] : memref<8x128xf32, #tpu.memory_space<vmem>>, vector<8x128xf32>
      tpu.vector_store %arg7[%c0_30, %c0_31], %37 {strides = array<i32>} : memref<8x128xf32, #tpu.memory_space<vmem>>, vector<8x128xf32>,
      %cst_32 = arith.constant 0.000000e+00 : f32
      %39 = vector.broadcast %cst_32 : f32 to vector<8x128xf32>
      %c0_33 = arith.constant 0 : index
      %c0_34 = arith.constant 0 : index
      %40 = vector.load %arg8[%c0_33, %c0_34] : memref<8x128xf32, #tpu.memory_space<vmem>>, vector<8x128xf32>
      tpu.vector_store %arg8[%c0_33, %c0_34], %39 {strides = array<i32>} : memref<8x128xf32, #tpu.memory_space<vmem>>, vector<8x128xf32>,
    } else {
    }
    %c0 = arith.constant 0 : index
    %c0_2 = arith.constant 0 : index
    %c0_3 = arith.constant 0 : index
    %c0_4 = arith.constant 0 : index
    %5 = vector.load %arg3[%c0, %c0_2, %c0_3, %c0_4] : memref<2x1x2x128xf32, #tpu.memory_space<vmem>>, vector<2x1x2x128xf32>
    %6 = vector.shape_cast %5 : vector<2x1x2x128xf32> to vector<2x2x128xf32>
    %c0_5 = arith.constant 0 : index
    %c0_6 = arith.constant 0 : index
    %c0_7 = arith.constant 0 : index
    %c0_8 = arith.constant 0 : index
    %7 = vector.load %arg4[%c0_5, %c0_6, %c0_7, %c0_8] : memref<2x1x2x128xf32, #tpu.memory_space<vmem>>, vector<2x1x2x128xf32>
    %8 = vector.shape_cast %7 : vector<2x1x2x128xf32> to vector<2x2x128xf32>
    %9 = arith.mulf %6, %8 : vector<2x2x128xf32>
    %c0_9 = arith.constant 0 : index
    %c0_10 = arith.constant 0 : index
    %10 = vector.load %arg6[%c0_9, %c0_10] : memref<8x128xf32, #tpu.memory_space<vmem>>, vector<1x128xf32>
    %cst = arith.constant dense<0.000000e+00> : vector<128xf32>
    %11 = vector.multi_reduction <add>, %9, %cst [0, 1] : vector<2x2x128xf32> to vector<128xf32>
    %12 = vector.shape_cast %11 : vector<128xf32> to vector<1x1x128xf32>
    %13 = vector.shape_cast %12 : vector<1x1x128xf32> to vector<1x128xf32>
    %14 = arith.addf %10, %13 : vector<1x128xf32>
    %c0_11 = arith.constant 0 : index
    %c0_12 = arith.constant 0 : index
    %15 = vector.load %arg6[%c0_11, %c0_12] : memref<8x128xf32, #tpu.memory_space<vmem>>, vector<1x128xf32>
    tpu.vector_store %arg6[%c0_11, %c0_12], %14 {strides = array<i32>} : memref<8x128xf32, #tpu.memory_space<vmem>>, vector<1x128xf32>,
    %16 = arith.mulf %6, %6 : vector<2x2x128xf32>
    %c0_13 = arith.constant 0 : index
    %c0_14 = arith.constant 0 : index
    %17 = vector.load %arg7[%c0_13, %c0_14] : memref<8x128xf32, #tpu.memory_space<vmem>>, vector<1x128xf32>
    %cst_15 = arith.constant dense<0.000000e+00> : vector<128xf32>
    %18 = vector.multi_reduction <add>, %16, %cst_15 [0, 1] : vector<2x2x128xf32> to vector<128xf32>
    %19 = vector.shape_cast %18 : vector<128xf32> to vector<1x1x128xf32>
    %20 = vector.shape_cast %19 : vector<1x1x128xf32> to vector<1x128xf32>
    %21 = arith.addf %17, %20 : vector<1x128xf32>
    %c0_16 = arith.constant 0 : index
    %c0_17 = arith.constant 0 : index
    %22 = vector.load %arg7[%c0_16, %c0_17] : memref<8x128xf32, #tpu.memory_space<vmem>>, vector<1x128xf32>
    tpu.vector_store %arg7[%c0_16, %c0_17], %21 {strides = array<i32>} : memref<8x128xf32, #tpu.memory_space<vmem>>, vector<1x128xf32>,
    %23 = arith.mulf %8, %8 : vector<2x2x128xf32>
    %c0_18 = arith.constant 0 : index
    %c0_19 = arith.constant 0 : index
    %24 = vector.load %arg8[%c0_18, %c0_19] : memref<8x128xf32, #tpu.memory_space<vmem>>, vector<1x128xf32>
    %cst_20 = arith.constant dense<0.000000e+00> : vector<128xf32>
    %25 = vector.multi_reduction <add>, %23, %cst_20 [0, 1] : vector<2x2x128xf32> to vector<128xf32>
    %26 = vector.shape_cast %25 : vector<128xf32> to vector<1x1x128xf32>
    %27 = vector.shape_cast %26 : vector<1x1x128xf32> to vector<1x128xf32>
    %28 = arith.addf %24, %27 : vector<1x128xf32>
    %c0_21 = arith.constant 0 : index
    %c0_22 = arith.constant 0 : index
    %29 = vector.load %arg8[%c0_21, %c0_22] : memref<8x128xf32, #tpu.memory_space<vmem>>, vector<1x128xf32>
    tpu.vector_store %arg8[%c0_21, %c0_22], %28 {strides = array<i32>} : memref<8x128xf32, #tpu.memory_space<vmem>>, vector<1x128xf32>,
    %c0_i32_23 = arith.constant 0 : i32
    %30 = arith.cmpi eq, %arg1, %c0_i32_23 : i32
    %c0_i32_24 = arith.constant 0 : i32
    %31 = arith.cmpi eq, %arg2, %c0_i32_24 : i32
    %32 = arith.andi %30, %31 : i1
    %33 = arith.extui %32 : i1 to i32
    %c0_i32_25 = arith.constant 0 : i32
    %34 = arith.cmpi ne, %33, %c0_i32_25 : i32
    scf.if %34 {
      %c0_26 = arith.constant 0 : index
      %c0_27 = arith.constant 0 : index
      %35 = vector.load %arg6[%c0_26, %c0_27] : memref<8x128xf32, #tpu.memory_space<vmem>>, vector<8x128xf32>
      %36 = vector.shape_cast %35 : vector<8x128xf32> to vector<1x8x128xf32>
      %cst_28 = arith.constant dense<0.000000e+00> : vector<1xf32>
      %37 = vector.multi_reduction <add>, %36, %cst_28 [1, 2] : vector<1x8x128xf32> to vector<1xf32>
      %38 = vector.shape_cast %37 : vector<1xf32> to vector<1x1x1xf32>
      %39 = vector.extract %38[0, 0, 0] : f32 from vector<1x1x1xf32>
      %c0_29 = arith.constant 0 : index
      %c0_30 = arith.constant 0 : index
      %40 = vector.load %arg7[%c0_29, %c0_30] : memref<8x128xf32, #tpu.memory_space<vmem>>, vector<8x128xf32>
      %41 = vector.shape_cast %40 : vector<8x128xf32> to vector<1x8x128xf32>
      %cst_31 = arith.constant dense<0.000000e+00> : vector<1xf32>
      %42 = vector.multi_reduction <add>, %41, %cst_31 [1, 2] : vector<1x8x128xf32> to vector<1xf32>
      %43 = vector.shape_cast %42 : vector<1xf32> to vector<1x1x1xf32>
      %44 = vector.extract %43[0, 0, 0] : f32 from vector<1x1x1xf32>
      %c0_32 = arith.constant 0 : index
      %c0_33 = arith.constant 0 : index
      %45 = vector.load %arg8[%c0_32, %c0_33] : memref<8x128xf32, #tpu.memory_space<vmem>>, vector<8x128xf32>
      %46 = vector.shape_cast %45 : vector<8x128xf32> to vector<1x8x128xf32>
      %cst_34 = arith.constant dense<0.000000e+00> : vector<1xf32>
      %47 = vector.multi_reduction <add>, %46, %cst_34 [1, 2] : vector<1x8x128xf32> to vector<1xf32>
      %48 = vector.shape_cast %47 : vector<1xf32> to vector<1x1x1xf32>
      %49 = vector.extract %48[0, 0, 0] : f32 from vector<1x1x1xf32>
      %cst_35 = arith.constant 2.000000e+00 : f32
      %50 = arith.mulf %cst_35, %39 : f32
      %cst_36 = arith.constant 1.000000e-10 : f32
      %51 = arith.addf %50, %cst_36 : f32
      %52 = arith.addf %44, %49 : f32
      %cst_37 = arith.constant 1.000000e-10 : f32
      %53 = arith.addf %52, %cst_37 : f32
      %54 = arith.divf %51, %53 : f32
      %cst_38 = arith.constant 1.000000e+00 : f32
      %55 = arith.subf %cst_38, %54 : f32
      %cst_39 = arith.constant 0.000000e+00 : f32
      %56 = vector.broadcast %cst_39 : f32 to vector<8x128xf32>
      %57 = vector.broadcast %55 : f32 to vector<8x128xf32>
      %58 = arith.addf %57, %56 : vector<8x128xf32>
      %c0_40 = arith.constant 0 : index
      %c0_41 = arith.constant 0 : index
      %c0_42 = arith.constant 0 : index
      %59 = vector.load %arg5[%c0_40, %c0_41, %c0_42] : memref<1x8x128xf32, #tpu.memory_space<vmem>>, vector<1x8x128xf32>
      %60 = vector.shape_cast %59 : vector<1x8x128xf32> to vector<8x128xf32>
      %61 = vector.shape_cast %58 : vector<8x128xf32> to vector<1x8x128xf32>
      tpu.vector_store %arg5[%c0_40, %c0_41, %c0_42], %61 {strides = array<i32>} : memref<1x8x128xf32, #tpu.memory_space<vmem>>, vector<1x8x128xf32>,
    } else {
    }
    return
  }
  func.func @transform_0(%arg0: i32, %arg1: i32, %arg2: i32) -> (i32, i32, i32, i32) {
    %c0_i32 = arith.constant 0 : i32
    %c0_i32_0 = arith.constant 0 : i32
    return %arg1, %arg0, %arg2, %c0_i32 : i32, i32, i32, i32
  }
  func.func @transform_1(%arg0: i32, %arg1: i32, %arg2: i32) -> (i32, i32, i32, i32) {
    %c0_i32 = arith.constant 0 : i32
    %c0_i32_0 = arith.constant 0 : i32
    return %arg1, %arg0, %arg2, %c0_i32 : i32, i32, i32, i32
  }
  func.func @transform_2(%arg0: i32, %arg1: i32, %arg2: i32) -> (i32, i32, i32) {
    %c0_i32 = arith.constant 0 : i32
    %c0_i32_0 = arith.constant 0 : i32
    %c0_i32_1 = arith.constant 0 : i32
    return %arg0, %c0_i32, %c0_i32_0 : i32, i32, i32
  }
}

</mosaic_0001>

<llo_original>
// kernel: tpu_custom_call.1
$region0: #{tpu_custom_call.1}
  #allocation0 [shape = 'u32[]', space=smem, size = 0x4, offset = 0x4, fixed_abs, tag = 'smem constant byte address 0x4 - core index']
  #allocation1 [shape = 'u32[144,128]{1,0:T(1,128)}', space=vmem, size = 0x12000, scoped, tag = 'internal scratch']
  #allocation2 [shape = 'f32[8,128]{1,0:T(8,128)}', space=vmem, size = 0x1000, scoped, tag = 'scratch operand']
  #allocation3 [shape = 'f32[8,128]{1,0:T(8,128)}', space=vmem, size = 0x1000, scoped, tag = 'scratch operand']
  #allocation4 [shape = 'f32[8,128]{1,0:T(8,128)}', space=vmem, size = 0x1000, scoped, tag = 'scratch operand']
  %s0 = inlined_call_operand.hbm [shape: f32[2,4,2,128], index: 0, kind: input, shape index: {}]
  %s1 = inlined_call_operand.hbm [shape: f32[2,4,2,128], index: 1, kind: input, shape index: {}]
  %s2 = inlined_call_operand.hbm [shape: f32[4,8,128], index: 2, kind: output, shape index: {}]
  %s3 = sld [smem:[#allocation0]]
  $region57: #{tpu_custom_call.1} parent=0
    _
  %s5 = ssub.s32 1, %s3
  %s6 = scalar_select 0, %s5, %s3
  $region1: #{tpu_custom_call.1} parent=0
    #allocation5 [shape = 'u8[4096]{0}', space=vmem, size = 0x1000, scoped, tag = 'input window, operand 0']
    #allocation6 [shape = 's32[2]{0}', space=sflag, size = 0x8, scoped, tag = 'scoped memory for tpu_custom_call.1']
    #allocation7 [shape = 's32[2]{0}', space=sflag, size = 0x8, scoped, tag = 'scoped memory for tpu_custom_call.1']
    #allocation8 [shape = 'u8[4096]{0}', space=vmem, size = 0x1000, scoped, tag = 'input window, operand 1']
    #allocation9 [shape = 's32[2]{0}', space=sflag, size = 0x8, scoped, tag = 'scoped memory for tpu_custom_call.1']
    #allocation10 [shape = 'u8[8192]{0}', space=vmem, size = 0x2000, scoped, tag = 'output window, operand 0']
    %7 = vsyncpa [#allocation6], 0
    %s8 = scalar_lea.sflag [#allocation6], 1
    %9 = vsyncpa %s8, 0
    %10 = vsyncpa [#allocation9], 0
    %s11 = scalar_lea.sflag [#allocation9], 1
    %12 = vsyncpa %s11, 0
    %13 = vsyncpa [#allocation7], 0
    %s14 = scalar_lea.sflag [#allocation7], 1
    %15 = vsyncpa %s14, 0
    loop: start=0, step=1, limit=6
    $region2: #{tpu_custom_call.1} parent=1 // loop_pre_header
      _
    $region3: #{tpu_custom_call.1} parent=1 // loop_header
      %s17 = sphi 0, %s21
      %p18 = scmp.ge.s32.totalorder %s17, 6
      %s24 = sphi 0, %s43
      %s25 = sphi 0, %s39
      %s26 = sphi 0, %s35
      %s27 = sphi 0, %s24
      %s28 = sphi 0, %s25
      %s29 = sphi 0, %s26
      %s30 = sphi 0, %s27
      %s31 = sphi 0, %s28
      %s32 = sphi 0, %s29
      %s50 = sphi 0, %s52
      %s53 = sphi 0, %s50
      %s54 = sphi 0, %s53
      %s70 = sphi 0, %s54
      %s80 = sphi 0, %s82
      %s83 = sphi 0, %s80
      %s84 = sphi 0, %s83
      %s100 = sphi 0, %s84
      %s106 = sphi 0, %s108
      %s109 = sphi 0, %s106
      %s110 = sphi 0, %s109
      %s126 = sphi 0, %s110
    $region4: #{tpu_custom_call.1} parent=1 // loop_header_branch
      %20 = sbr.rel (%p18) target = $region8
    $region5: #{tpu_custom_call.1} parent=1 // loop_body
      %s22 = ssub.s32 %s17, 1
      %s23 = ssub.s32 %s17, 2
      %s33 = sadd.s32 1, %s26
      %p34 = scmp.ge.s32.totalorder %s33, 1
      %s35 = scalar_select %p34, 0, %s33
      %s36 = sadd.s32 1, %s25
      %s37 = scalar_select %p34, %s36, %s25
      %p38 = scmp.ge.s32.totalorder %s37, 1
      %s39 = scalar_select %p38, 0, %s37
      %s40 = sadd.s32 1, %s24
      %s41 = scalar_select %p38, %s40, %s24
      %p42 = scmp.ge.s32.totalorder %s41, 4
      %s43 = scalar_select %p42, 0, %s41
      %s44 = ssub.s32 %s25, %s39
      %s45 = ssub.s32 %s24, %s43
      %s46 = sor.u32 %s44, %s45
      %s47 = ssub.s32 %s26, %s35
      %s48 = sor.u32 %s46, %s47
      %p49 = scmp.eq.s32.totalorder %s48, 0
      %s51 = sadd.s32 %s50, 1
      %s52 = scalar_select %p49, %s50, %s51
      %p55 = pneg %p49
      %p56 = scmp.eq.s32.totalorder %s17, 3
      %p57 = por %p55, %p56
      %p58 = scmp.ne.s32.totalorder %s50, %s53
      %p59 = scmp.eq.s32.totalorder %s17, 0
      %p60 = por %p58, %p59
      %p61 = scmp.ne.s32.totalorder %s50, %s53
      %p62 = scmp.eq.s32.totalorder %s22, 3
      %p63 = por %p61, %p62
      %p64 = scmp.ne.s32.totalorder %s53, %s54
      %p65 = scmp.eq.s32.totalorder %s22, 0
      %p66 = por %p64, %p65
      %p67 = scmp.ne.s32.totalorder %s53, %s54
      %p68 = scmp.eq.s32.totalorder %s23, 3
      %p69 = por %p67, %p68
      %p71 = scmp.ne.s32.totalorder %s54, %s70
      %p72 = scmp.eq.s32.totalorder %s23, 0
      %p73 = por %p71, %p72
      %s74 = ssub.s32 %s25, %s39
      %s75 = ssub.s32 %s24, %s43
      %s76 = sor.u32 %s74, %s75
      %s77 = ssub.s32 %s26, %s35
      %s78 = sor.u32 %s76, %s77
      %p79 = scmp.eq.s32.totalorder %s78, 0
      %s81 = sadd.s32 %s80, 1
      %s82 = scalar_select %p79, %s80, %s81
      %p85 = pneg %p79
      %p86 = scmp.eq.s32.totalorder %s17, 3
      %p87 = por %p85, %p86
      %p88 = scmp.ne.s32.totalorder %s80, %s83
      %p89 = scmp.eq.s32.totalorder %s17, 0
      %p90 = por %p88, %p89
      %p91 = scmp.ne.s32.totalorder %s80, %s83
      %p92 = scmp.eq.s32.totalorder %s22, 3
      %p93 = por %p91, %p92
      %p94 = scmp.ne.s32.totalorder %s83, %s84
      %p95 = scmp.eq.s32.totalorder %s22, 0
      %p96 = por %p94, %p95
      %p97 = scmp.ne.s32.totalorder %s83, %s84
      %p98 = scmp.eq.s32.totalorder %s23, 3
      %p99 = por %p97, %p98
      %p101 = scmp.ne.s32.totalorder %s84, %s100
      %p102 = scmp.eq.s32.totalorder %s23, 0
      %p103 = por %p101, %p102
      %s104 = ssub.s32 %s24, %s43
      %p105 = scmp.eq.s32.totalorder %s104, 0
      %s107 = sadd.s32 %s106, 1
      %s108 = scalar_select %p105, %s106, %s107
      %p111 = pneg %p105
      %p112 = scmp.eq.s32.totalorder %s17, 3
      %p113 = por %p111, %p112
      %p114 = scmp.ne.s32.totalorder %s106, %s109
      %p115 = scmp.eq.s32.totalorder %s17, 0
      %p116 = por %p114, %p115
      %p117 = scmp.ne.s32.totalorder %s106, %s109
      %p118 = scmp.eq.s32.totalorder %s22, 3
      %p119 = por %p117, %p118
      %p120 = scmp.ne.s32.totalorder %s109, %s110
      %p121 = scmp.eq.s32.totalorder %s22, 0
      %p122 = por %p120, %p121
      %p123 = scmp.ne.s32.totalorder %s109, %s110
      %p124 = scmp.eq.s32.totalorder %s23, 3
      %p125 = por %p123, %p124
      %p127 = scmp.ne.s32.totalorder %s110, %s126
      %p128 = scmp.eq.s32.totalorder %s23, 0
      %p129 = por %p127, %p128
      %p130 = scmp.le.s32.totalorder 1, %s17
      %p131 = scmp.lt.s32.totalorder %s17, 5
      %p132 = pnand %p130, %p131
      %p133 = pneg %p132
      // Predicated region
      $region9: #{tpu_custom_call.1} parent=5 // pred_check
        _
      $region10: #{tpu_custom_call.1} parent=5 // pred_check_branch
        %135 = sbr.rel (%p132) target = $region12
      $region11: #{tpu_custom_call.1} parent=5 // pred_region
        %s136 = ssub.s32 %s17, 1
      $region12: #{tpu_custom_call.1} parent=5 // pred_fallthru
        _
      %p137 = scmp.lt.s32.totalorder %s17, 4
      // Predicated region
      $region13: #{tpu_custom_call.1} parent=5 // pred_check
        %p138 = pneg %p137
      $region14: #{tpu_custom_call.1} parent=5 // pred_check_branch
        %140 = sbr.rel (%p138) target = $region16
      $region15: #{tpu_custom_call.1} parent=5 // pred_region
        // Predicated region
        $region17: #{tpu_custom_call.1} parent=15 // pred_check
          %p141 = pneg %p60
        $region18: #{tpu_custom_call.1} parent=15 // pred_check_branch
          %143 = sbr.rel (%p141) target = $region20
        $region19: #{tpu_custom_call.1} parent=15 // pred_region
          %s144 = sand.u32 %s50, 1
          %s145 = scalar_lea.sflag [#allocation6], %s144
          %s146 = sand.u32 %s50, 1
          %s147 = smul.addr %s146, 4
          %s148 = scalar_lea.vmem [#allocation5], %s147
          %s149 = smul.u32 2, %s25
          %s151 = ssub.s32 64, 64
          %152 = vsyncadd %s145, %s151
          %s153 = sadd.s32 %s26, %s24
          %s154 = smul.addr %s149, 4
          %s155 = sadd.s32 %s153, %s154
          %s156 = smul.addr %s155, 32
          %s157 = scalar_lea.hbm %s0, %s156
          %s158 = sshll.u32 %s148, 4
          %s159 = int_to_ptr.vmem [resolvable:$true] %s158
          %164 = dma.hbm_to_vmem [thread:$0]  %s157, 64, %s159, %s145, 128, 32, 2
        $region20: #{tpu_custom_call.1} parent=15 // pred_fallthru
          _
        // Predicated region
        $region21: #{tpu_custom_call.1} parent=15 // pred_check
          %p165 = pneg %p90
        $region22: #{tpu_custom_call.1} parent=15 // pred_check_branch
          %167 = sbr.rel (%p165) target = $region24
        $region23: #{tpu_custom_call.1} parent=15 // pred_region
          %s168 = sand.u32 %s80, 1
          %s169 = scalar_lea.sflag [#allocation9], %s168
          %s170 = sand.u32 %s80, 1
          %s171 = smul.addr %s170, 4
          %s172 = scalar_lea.vmem [#allocation8], %s171
          %s173 = smul.u32 2, %s25
          %s175 = ssub.s32 64, 64
          %176 = vsyncadd %s169, %s175
          %s177 = sadd.s32 %s26, %s24
          %s178 = smul.addr %s173, 4
          %s179 = sadd.s32 %s177, %s178
          %s180 = smul.addr %s179, 32
          %s181 = scalar_lea.hbm %s1, %s180
          %s182 = sshll.u32 %s172, 4
          %s183 = int_to_ptr.vmem [resolvable:$true] %s182
          %188 = dma.hbm_to_vmem [thread:$0]  %s181, 64, %s183, %s169, 128, 32, 2
        $region24: #{tpu_custom_call.1} parent=15 // pred_fallthru
          _
      $region16: #{tpu_custom_call.1} parent=5 // pred_fallthru
        _
      %p189 = scmp.le.s32.totalorder 1, %s17
      %p190 = scmp.lt.s32.totalorder %s17, 5
      %p191 = pnand %p189, %p190
      %p192 = pneg %p191
      // Predicated region
      $region25: #{tpu_custom_call.1} parent=5 // pred_check
        _
      $region26: #{tpu_custom_call.1} parent=5 // pred_check_branch
        %194 = sbr.rel (%p191) target = $region28
      $region27: #{tpu_custom_call.1} parent=5 // pred_region
        %s195 = ssub.s32 %s17, 1
        %s196 = sand.u32 %s53, 1
        %s197 = scalar_lea.sflag [#allocation6], %s196
        %s198 = sand.u32 %s53, 1
        %s199 = smul.addr %s198, 4
        %s200 = scalar_lea.vmem [#allocation5], %s199
        // Predicated region
        $region29: #{tpu_custom_call.1} parent=27 // pred_check
          %p201 = pneg %p66
        $region30: #{tpu_custom_call.1} parent=27 // pred_check_branch
          %203 = sbr.rel (%p201) target = $region32
        $region31: #{tpu_custom_call.1} parent=27 // pred_region
          %204 = dma.done %s197, 64
        $region32: #{tpu_custom_call.1} parent=27 // pred_fallthru
          _
        %s205 = sand.u32 %s83, 1
        %s206 = scalar_lea.sflag [#allocation9], %s205
        %s207 = sand.u32 %s83, 1
        %s208 = smul.addr %s207, 4
        %s209 = scalar_lea.vmem [#allocation8], %s208
        // Predicated region
        $region33: #{tpu_custom_call.1} parent=27 // pred_check
          %p210 = pneg %p96
        $region34: #{tpu_custom_call.1} parent=27 // pred_check_branch
          %212 = sbr.rel (%p210) target = $region36
        $region35: #{tpu_custom_call.1} parent=27 // pred_region
          %213 = dma.done %s206, 64
        $region36: #{tpu_custom_call.1} parent=27 // pred_fallthru
          _
        %s214 = sand.u32 %s53, 1
        %s215 = scalar_lea.sflag [#allocation6], %s214
        %s216 = sand.u32 %s53, 1
        %s217 = smul.addr %s216, 4
        %s218 = scalar_lea.vmem [#allocation5], %s217
        %p219 = pneg %p66
        %p220 = pneg %p63
        %s221 = sand.u32 %s83, 1
        %s222 = scalar_lea.sflag [#allocation9], %s221
        %s223 = sand.u32 %s83, 1
        %s224 = smul.addr %s223, 4
        %s225 = scalar_lea.vmem [#allocation8], %s224
        %p226 = pneg %p96
        %p227 = pneg %p93
        %p228 = pneg %p122
        %p229 = pneg %p119
        %s230 = sand.u32 %s109, 1
        %s231 = scalar_lea.sflag [#allocation7], %s230
        %s232 = sand.u32 %s109, 1
        %s233 = smul.addr %s232, 8
        %s234 = scalar_lea.vmem [#allocation10], %s233
        %s235 = smul.u32 2, %s28
        %s236 = smul.u32 2, %s28
        %p237 = scmp.eq.s32.totalorder %s28, 0
        %p238 = scmp.eq.s32.totalorder %s29, 0
        %p239 = pnand %p237, %p238
        %p240 = pneg %p239
        // Predicated region
        $region37: #{tpu_custom_call.1} parent=27 // pred_check
          _
        $region38: #{tpu_custom_call.1} parent=27 // pred_check_branch
          %242 = sbr.rel (%p239) target = $region40
        $region39: #{tpu_custom_call.1} parent=27 // pred_region
          %243 = vst [vmem:[#allocation2] sm:$0xff] 0.0
          %244 = vst [vmem:[#allocation3] sm:$0xff] 0.0
          %245 = vst [vmem:[#allocation4] sm:$0xff] 0.0
        $region40: #{tpu_custom_call.1} parent=27 // pred_fallthru
          _
        %v246 = vld [vmem:[%s200] sm:$0x3]
        %v247 = vld [vmem:[%s200 + $0x2] sm:$0x3]
        %v248 = vld [vmem:[%s209] sm:$0x3]
        %v249 = vld [vmem:[%s209 + $0x2] sm:$0x3]
        %v250 = vmul.f32 %v246, %v248
        %v251 = vmul.f32 %v247, %v249
        %v252 = vld [vmem:[#allocation2] sm:$0x1]
        %vm253 = vcmask 1041408
        %v254 = vsel %vm253, %v250, 0.0
        %v255 = vsel %vm253, %v251, 0.0
        %v256 = vadd.f32 %v254, %v255
        %v257 = vrot.slane %v256, 4
        %v258 = vadd.f32 %v256, %v257
        %v259 = vrot.slane %v258, 2
        %v260 = vadd.f32 %v258, %v259
        %v261 = vrot.slane %v260, 1
        %v262 = vadd.f32 %v260, %v261
        %v263 = vadd.f32 %v252, %v262
        %264 = vst [vmem:[#allocation2] sm:$0x1] %v263
        %v265 = vmul.f32 %v246, %v246
        %v266 = vmul.f32 %v247, %v247
        %v267 = vld [vmem:[#allocation3] sm:$0x1]
        %v268 = vsel %vm253, %v265, 0.0
        %v269 = vsel %vm253, %v266, 0.0
        %v270 = vadd.f32 %v268, %v269
        %v271 = vrot.slane %v270, 4
        %v272 = vadd.f32 %v270, %v271
        %v273 = vrot.slane %v272, 2
        %v274 = vadd.f32 %v272, %v273
        %v275 = vrot.slane %v274, 1
        %v276 = vadd.f32 %v274, %v275
        %v277 = vadd.f32 %v267, %v276
        %278 = vst [vmem:[#allocation3] sm:$0x1] %v277
        %v279 = vmul.f32 %v248, %v248
        %v280 = vmul.f32 %v249, %v249
        %v281 = vld [vmem:[#allocation4] sm:$0x1]
        %v282 = vsel %vm253, %v279, 0.0
        %v283 = vsel %vm253, %v280, 0.0
        %v284 = vadd.f32 %v282, %v283
        %v285 = vrot.slane %v284, 4
        %v286 = vadd.f32 %v284, %v285
        %v287 = vrot.slane %v286, 2
        %v288 = vadd.f32 %v286, %v287
        %v289 = vrot.slane %v288, 1
        %v290 = vadd.f32 %v288, %v289
        %v291 = vadd.f32 %v281, %v290
        %292 = vst [vmem:[#allocation4] sm:$0x1] %v291
        // Predicated region
        $region41: #{tpu_custom_call.1} parent=27 // pred_check
          _
        $region42: #{tpu_custom_call.1} parent=27 // pred_check_branch
          %294 = sbr.rel (%p239) target = $region44
        $region43: #{tpu_custom_call.1} parent=27 // pred_region
          %v295 = vld [vmem:[#allocation2] sm:$0xff]
          %296 = vadd.xlane.f32.xlu0 %v295
          %v297 = vpop.xlane.xlu0 %296
          %v298 = vrot.slane %v297, 4
          %v299 = vadd.f32 %v297, %v298
          %v300 = vrot.slane %v299, 2
          %v301 = vadd.f32 %v299, %v300
          %v302 = vrot.slane %v301, 1
          %v303 = vadd.f32 %v301, %v302
          %s304 = vtos %v303
          %v305 = vld [vmem:[#allocation3] sm:$0xff]
          %306 = vadd.xlane.f32.xlu0 %v305
          %v307 = vpop.xlane.xlu0 %306
          %v308 = vrot.slane %v307, 4
          %v309 = vadd.f32 %v307, %v308
          %v310 = vrot.slane %v309, 2
          %v311 = vadd.f32 %v309, %v310
          %v312 = vrot.slane %v311, 1
          %v313 = vadd.f32 %v311, %v312
          %s314 = vtos %v313
          %v315 = vld [vmem:[#allocation4] sm:$0xff]
          %316 = vadd.xlane.f32.xlu0 %v315
          %v317 = vpop.xlane.xlu0 %316
          %v318 = vrot.slane %v317, 4
          %v319 = vadd.f32 %v317, %v318
          %v320 = vrot.slane %v319, 2
          %v321 = vadd.f32 %v319, %v320
          %v322 = vrot.slane %v321, 1
          %v323 = vadd.f32 %v321, %v322
          %s324 = vtos %v323
          %s325 = smul.f32 %s304, 2.0
          %s326 = sadd.f32 %s325, 1e-10
          %s327 = sadd.f32 %s314, %s324
          %s328 = sadd.f32 %s327, 1e-10
          %v329 = vstv %s328
          %v330 = vrcp.pop %v329
          %s331 = vtos %v330
          %s332 = smul.f32 %s326, %s331
          %s333 = ssub.f32 1.0, %s332
          %v334 = vstv %s333
          %v335 = vadd.f32 %v334, 0.0
          %336 = vst [vmem:[%s234] sm:$0xff] %v335
        $region44: #{tpu_custom_call.1} parent=27 // pred_fallthru
          _
        %s337 = sand.u32 %s109, 1
        %s338 = scalar_lea.sflag [#allocation7], %s337
        %s339 = sand.u32 %s109, 1
        %s340 = smul.addr %s339, 8
        %s341 = scalar_lea.vmem [#allocation10], %s340
        // Predicated region
        $region45: #{tpu_custom_call.1} parent=27 // pred_check
          %p342 = pneg %p119
        $region46: #{tpu_custom_call.1} parent=27 // pred_check_branch
          %344 = sbr.rel (%p342) target = $region48
        $region47: #{tpu_custom_call.1} parent=27 // pred_region
          %s346 = ssub.s32 128, 128
          %347 = vsyncadd %s338, %s346
          %s348 = smul.addr %s27, 128
          %s349 = scalar_lea.hbm %s2, %s348
          %s351 = sshll.u32 %s341, 4
          %s352 = int_to_ptr.vmem [resolvable:$true] %s351
          %354 = dma.vmem_to_hbm [thread:$0]  %s352, 128, %s349, %s338
        $region48: #{tpu_custom_call.1} parent=27 // pred_fallthru
          _
      $region28: #{tpu_custom_call.1} parent=5 // pred_fallthru
        _
      %p355 = scmp.le.s32.totalorder 2, %s17
      // Predicated region
      $region49: #{tpu_custom_call.1} parent=5 // pred_check
        %p356 = pneg %p355
      $region50: #{tpu_custom_call.1} parent=5 // pred_check_branch
        %358 = sbr.rel (%p356) target = $region52
      $region51: #{tpu_custom_call.1} parent=5 // pred_region
        %s359 = ssub.s32 %s17, 2
        // Predicated region
        $region53: #{tpu_custom_call.1} parent=51 // pred_check
          %p360 = pneg %p125
        $region54: #{tpu_custom_call.1} parent=51 // pred_check_branch
          %362 = sbr.rel (%p360) target = $region56
        $region55: #{tpu_custom_call.1} parent=51 // pred_region
          %s363 = sand.u32 %s110, 1
          %s364 = scalar_lea.sflag [#allocation7], %s363
          %s365 = sand.u32 %s110, 1
          %s366 = smul.addr %s365, 8
          %s367 = scalar_lea.vmem [#allocation10], %s366
          %368 = dma.done %s364, 128
        $region56: #{tpu_custom_call.1} parent=51 // pred_fallthru
          _
      $region52: #{tpu_custom_call.1} parent=5 // pred_fallthru
        _
    $region6: #{tpu_custom_call.1} parent=1 // loop_footer
      %s21 = sadd.s32 1, %s17
    $region7: #{tpu_custom_call.1} parent=1 // loop_footer_branch
      %16 = sbr.rel target = $region3
    $region8: #{tpu_custom_call.1} parent=1 // loop_exit
      _
    %369 = vsyncpa [#allocation6], 1
    %s370 = scalar_lea.sflag [#allocation6], 1
    %371 = vsyncpa %s370, 1
    %372 = vsyncpa [#allocation9], 1
    %s373 = scalar_lea.sflag [#allocation9], 1
    %374 = vsyncpa %s373, 1
    %375 = vsyncpa [#allocation7], 1
    %s376 = scalar_lea.sflag [#allocation7], 1
    %377 = vsyncpa %s376, 1

</llo_original>
